<compile_context>
chip_gen: v6e
topology: v6e:2x2x1
jax: 0.10.0
libtpu: 0.0.40
codegen_flags: <defaults>
</compile_context>

<pallas_src>
import functools
import math

import jax
import jax.numpy as jnp
from jax.experimental import pallas as pl
from jax.experimental.pallas import tpu as pltpu

LANE = 128
_MIB = 1024 * 1024


def _round_up(x, m):
    return ((x + m - 1) // m) * m


def _tpu_memory_profile():
    """Best-effort (vmem_capacity_bytes, is_two_core) query with safe fallbacks."""
    vmem = None
    try:
        vmem = int(pltpu.get_tpu_info().vmem_capacity_bytes)
    except Exception:
        pass
    kind = ""
    try:
        kind = jax.devices()[0].device_kind.lower()
    except Exception:
        pass
    is_v7 = ("v7" in kind) or ("7x" in kind)
    if vmem is None:
        vmem = 64 * _MIB          # conservative: valid on every generation
    if is_v7:
        vmem = min(vmem, 64 * _MIB)   # per-TensorCore budget on v7x
    return vmem, is_v7


def _select_tiles(n_pad0, tm_override, tk_override):
    """Generation-aware (tm, tk, tm1, N_pad, vmem_limit) selection."""
    vmem_cap, two_cores = _tpu_memory_profile()
    if vmem_cap >= 100 * _MIB:            # v5e / v6e: 128 MiB VMEM, 1 TensorCore
        tm_target, tk_target, vmem_limit = 2048, 2048, 96 * _MIB
    else:                                  # v7x: 64 MiB VMEM per TensorCore
        tm_target, tk_target, vmem_limit = 2048, 1024, 52 * _MIB
    if tm_override is not None:
        tm_target = tm_override
    if tk_override is not None:
        tk_target = tk_override
    assert tm_target % LANE == 0 and tk_target % LANE == 0

    tm = min(tm_target, n_pad0)
    n_pad = _round_up(n_pad0, tm)

    # v7x: the aggregate's row-tile axis is "parallel" (split across the two
    # TensorCores) -> prefer an even number of row tiles so neither core idles.
    if two_cores and tm_override is None:
        ntiles = n_pad // tm
        if ntiles % 2 == 1 and tm % 256 == 0 and (ntiles == 1 or tm >= 1024):
            tm //= 2

    tk = min(tk_target, n_pad)
    if n_pad % tk != 0:
        tk = tm

    # Kernel 1 (feature transform) is secondary; use a smaller VMEM-friendly tile.
    tm1 = next(c for c in (512, 384, 256, 128) if n_pad % c == 0)
    return tm, tk, tm1, n_pad, vmem_limit


# ---------------------------------------------------------------------------
# Kernel 1: fused per-relation feature transform + skip path.
#   acc  = x_bf16 @ [W_rel[0] | ... | W_rel[R-1] | W_skip]   (one wide MXU matmul)
#   xw   = acc[:, :R*Fout]  (bf16)
#   skip = acc[:, R*Fout:] + b   (f32)
# grid = (row tiles,)  -- weights are VMEM-resident (index_map constant).
# ---------------------------------------------------------------------------
def _feat_transform_kernel(x_ref, w_ref, b_ref, xw_ref, skip_ref, *, rel_cols):
    acc = jnp.dot(x_ref[...].astype(jnp.bfloat16), w_ref[...],
                  preferred_element_type=jnp.float32)
    xw_ref[...] = acc[:, :rel_cols].astype(xw_ref.dtype)
    skip_ref[...] = acc[:, rel_cols:] + b_ref[...]


def _feat_transform(x, w_fused, b_skip, *, num_relations, tm, xw_dtype,
                    vmem_limit_bytes):
    N, Fin = x.shape
    _, cols = w_fused.shape
    fout = cols // (num_relations + 1)
    rel_cols = num_relations * fout
    kernel = functools.partial(_feat_transform_kernel, rel_cols=rel_cols)
    return pl.pallas_call(
        kernel,
        out_shape=(jax.ShapeDtypeStruct((N, rel_cols), xw_dtype),
                   jax.ShapeDtypeStruct((N, fout), jnp.float32)),
        grid_spec=pltpu.PrefetchScalarGridSpec(
            num_scalar_prefetch=0,
            grid=(N // tm,),
            in_specs=[
                pl.BlockSpec((tm, Fin), lambda i: (i, 0)),     # x row tile
                pl.BlockSpec((Fin, cols), lambda i: (0, 0)),   # fused weights (resident)
                pl.BlockSpec((1, fout), lambda i: (0, 0)),     # bias
            ],
            out_specs=[
                pl.BlockSpec((tm, rel_cols), lambda i: (i, 0)),  # xw
                pl.BlockSpec((tm, fout), lambda i: (i, 0)),      # skip
            ],
        ),
        compiler_params=pltpu.CompilerParams(
            dimension_semantics=("parallel",),
            vmem_limit_bytes=vmem_limit_bytes),
    )(x, w_fused, b_skip)


# ---------------------------------------------------------------------------
# Kernel 2: tiled message aggregation.
#   out[i] = skip[i] + sum_{r,k} adj[r, i-tile, k-tile] @ xw[k-tile, r-block]
# Output block depends only on the row-tile axis -> VMEM-resident accumulator.
# ---------------------------------------------------------------------------
def _aggregate_kernel(adj_ref, xw_ref, skip_ref, o_ref, *, apply_relu):
    r = pl.program_id(1)
    k = pl.program_id(2)

    @pl.when(jnp.logical_and(r == 0, k == 0))
    def _():
        o_ref[...] = skip_ref[...]

    o_ref[...] += jnp.dot(adj_ref[...], xw_ref[...],
                          preferred_element_type=jnp.float32)

    if apply_relu:
        @pl.when(jnp.logical_and(r == pl.num_programs(1) - 1,
                                 k == pl.num_programs(2) - 1))
        def _():
            o_ref[...] = jnp.maximum(o_ref[...], 0.0)


def _aggregate(adj, xw, skip, *, tm, tk, apply_relu, vmem_limit_bytes):
    R, N, _ = adj.shape
    fout = skip.shape[1]
    kernel = functools.partial(_aggregate_kernel, apply_relu=apply_relu)
    return pl.pallas_call(
        kernel,
        out_shape=jax.ShapeDtypeStruct((N, fout), jnp.float32),
        grid_spec=pltpu.PrefetchScalarGridSpec(
            num_scalar_prefetch=0,
            grid=(N // tm, R, N // tk),
            in_specs=[
                pl.BlockSpec((None, tm, tk), lambda i, r, k: (r, i, k)),  # adj tile
                pl.BlockSpec((tk, fout), lambda i, r, k: (k, r)),         # xw block
                pl.BlockSpec((tm, fout), lambda i, r, k: (i, 0)),         # skip (resident)
            ],
            out_specs=pl.BlockSpec((tm, fout), lambda i, r, k: (i, 0)),
        ),
        compiler_params=pltpu.CompilerParams(
            dimension_semantics=("parallel", "arbitrary", "arbitrary"),
            vmem_limit_bytes=vmem_limit_bytes),
    )(adj, xw, skip)


def rgcn_forward(node_feats, adj_norm, params, *, tm=None, tk=None,
                 adj_dtype=jnp.bfloat16, xw_dtype=jnp.bfloat16):
    """Full RGCN forward. ReLU on all layers except the last (dropout=0).

    node_feats: (N, Fin) f32; adj_norm: (R, N, N) f32 row-normalized;
    params: list of (w_rel (R, fin, fout), w_skip (fin, fout), b (1, fout)).
    tm / tk override the generation-aware adjacency tile selection (multiples
    of 128); leave None for auto selection.
    """
    N, Fin = node_feats.shape
    R = adj_norm.shape[0]
    fout_final = params[-1][0].shape[2]

    n_pad0 = _round_up(N, LANE)
    tm2, tk2, tm1, n_pad, vmem_limit = _select_tiles(n_pad0, tm, tk)

    x = jnp.pad(node_feats.astype(jnp.float32),
                ((0, n_pad - N), (0, _round_up(Fin, LANE) - Fin)))
    adj = jnp.pad(adj_norm,
                  ((0, 0), (0, n_pad - N), (0, n_pad - N))).astype(adj_dtype)

    num_layers = len(params)
    for l, (w_rel, w_skip, b_skip) in enumerate(params):
        fin, fout = w_rel.shape[1], w_rel.shape[2]
        fin_p, fout_p = _round_up(fin, LANE), _round_up(fout, LANE)
        w_rel_p = jnp.pad(w_rel, ((0, 0), (0, fin_p - fin), (0, fout_p - fout)))
        w_skip_p = jnp.pad(w_skip, ((0, fin_p - fin), (0, fout_p - fout)))
        # Fuse all relation weights + skip weight into one wide bf16 matrix so
        # kernel 1 is a single wide MXU matmul with VMEM-resident weights.
        w_fused = jnp.concatenate([w_rel_p[r] for r in range(R)] + [w_skip_p],
                                  axis=1).astype(jnp.bfloat16)
        b_p = jnp.pad(b_skip, ((0, 0), (0, fout_p - fout)))

        xw, skip = _feat_transform(x, w_fused, b_p, num_relations=R, tm=tm1,
                                   xw_dtype=xw_dtype,
                                   vmem_limit_bytes=vmem_limit)
        x = _aggregate(adj, xw, skip, tm=tm2, tk=tk2,
                       apply_relu=(l < num_layers - 1),
                       vmem_limit_bytes=vmem_limit)

    return x[:N, :fout_final]


def init_rgcn_params(key, num_layers, in_feats, hidden_feats, out_feats,
                     num_relations):
    """Deterministic parameter init matching the module's shapes."""
    dims = ([in_feats] + [hidden_feats] * (num_layers - 1),
            [hidden_feats] * (num_layers - 1) + [out_feats])
    params = []
    for l in range(num_layers):
        fin, fout = dims[0][l], dims[1][l]
        key, k1, k2, k3 = jax.random.split(key, 4)
        # kaiming_uniform_(a=sqrt(5)) bound = 1/sqrt(fan_in)
        bound_rel = 1.0 / math.sqrt(fin)
        w_rel = jax.random.uniform(k1, (num_relations, fin, fout),
                                   jnp.float32, -bound_rel, bound_rel)
        # nn.Linear default init
        bound_lin = 1.0 / math.sqrt(fin)
        w_skip = jax.random.uniform(k2, (fin, fout), jnp.float32,
                                    -bound_lin, bound_lin)
        b_skip = jax.random.uniform(k3, (1, fout), jnp.float32,
                                    -bound_lin, bound_lin)
        params.append((w_rel, w_skip, b_skip))
    return params


def build_adjacency(key, num_relations, num_nodes):
    """Dense synthetic multi-relational graph with shared edge structure.

    Returns row-normalized adjacencies (R, N, N) f32 reproducing
    torch_sparse matmul(..., reduce='mean') semantics:
        out_i = sum_j value_r[i,j] * x_j / deg_i
    """
    k_mask, k_val = jax.random.split(key)
    mask = (jax.random.uniform(k_mask, (num_nodes, num_nodes)) < 0.15)
    mask = mask.astype(jnp.float32)
    vals = jax.random.uniform(k_val, (num_relations, num_nodes, num_nodes),
                              jnp.float32, 0.0, 1.0)
    deg = jnp.maximum(mask.sum(axis=1, keepdims=True), 1.0)  # (N, 1)
    adj = (mask[None, :, :] * vals) / deg[None, :, :]
    return adj


if __name__ == "__main__":
    key = jax.random.PRNGKey(0)
    k_feat, k_adj, k_param = jax.random.split(key, 3)

    # Small shapes consistent with the module; tile override 128 so the
    # 256-node graph exercises multi-tile rows/cols and the (r, k) reduction.
    num_layers = 3
    num_relations = 4
    num_nodes = 256
    in_feats = 8
    hidden_feats = 32
    out_feats = 16

    node_feats = jax.random.normal(k_feat, (num_nodes, in_feats), jnp.float32)
    adj_norm = build_adjacency(k_adj, num_relations, num_nodes)
    params = init_rgcn_params(k_param, num_layers, in_feats, hidden_feats,
                              out_feats, num_relations)

    out = rgcn_forward(node_feats, adj_norm, params, tm=128, tk=128)
    out = jax.block_until_ready(out)
    assert out.shape == (num_nodes, out_feats)

    # Pure-JAX reference mirroring the kernel's bf16 quantization of the
    # streamed tensors (adjacency, fused weights, per-relation XW, x input to
    # the MXU); accumulation in f32.
    adj_q = adj_norm.astype(jnp.bfloat16).astype(jnp.float32)
    x_ref = node_feats
    for l, (w_rel, w_skip, b_skip) in enumerate(params):
        xq = x_ref.astype(jnp.bfloat16).astype(jnp.float32)
        wr = w_rel.astype(jnp.bfloat16).astype(jnp.float32)
        ws = w_skip.astype(jnp.bfloat16).astype(jnp.float32)
        xw = jnp.einsum('nf,rfo->rno', xq, wr)
        xw = xw.astype(jnp.bfloat16).astype(jnp.float32)
        skip = xq @ ws + b_skip
        x_ref = jnp.einsum('rij,rjo->io', adj_q, xw) + skip
        if l < num_layers - 1:
            x_ref = jnp.maximum(x_ref, 0.0)

    max_err = float(jnp.max(jnp.abs(out - x_ref)))
    assert jnp.allclose(out, x_ref, atol=3e-2, rtol=3e-2), max_err

    print("KERNEL_OK")
</pallas_src>

<mosaic_0001>
module attributes {stable_mosaic.version = 11 : i64} {
  func.func @_feat_transform_kernel(%arg0: i32, %arg1: memref<256x128xf32, #tpu.memory_space<vmem>>, %arg2: memref<128x640xbf16, #tpu.memory_space<vmem>>, %arg3: memref<1x128xf32, #tpu.memory_space<vmem>>, %arg4: memref<256x512xbf16, #tpu.memory_space<vmem>>, %arg5: memref<256x128xf32, #tpu.memory_space<vmem>>) attributes {dimension_semantics = [#tpu.dimension_semantics<parallel>], iteration_bounds = array<i64: 1>, scalar_prefetch = 0 : i64, scratch_operands = 0 : i64, tpu.core_type = #tpu.core_type<tc>, window_params = [{transform_indices = @transform_0, window_bounds = array<i64: 256, 128>}, {pipeline_mode = #tpu.pipeline_mode<synchronous>, transform_indices = @transform_1, window_bounds = array<i64: 128, 640>}, {pipeline_mode = #tpu.pipeline_mode<synchronous>, transform_indices = @transform_2, window_bounds = array<i64: 1, 128>}, {transform_indices = @transform_3, window_bounds = array<i64: 256, 512>}, {transform_indices = @transform_4, window_bounds = array<i64: 256, 128>}]} {
    %c0 = arith.constant 0 : index
    %c0_0 = arith.constant 0 : index
    %0 = vector.load %arg1[%c0, %c0_0] : memref<256x128xf32, #tpu.memory_space<vmem>>, vector<256x128xf32>
    %1 = arith.truncf %0 : vector<256x128xf32> to vector<256x128xbf16>
    %c0_1 = arith.constant 0 : index
    %c0_2 = arith.constant 0 : index
    %2 = vector.load %arg2[%c0_1, %c0_2] : memref<128x640xbf16, #tpu.memory_space<vmem>>, vector<128x640xbf16>
    %cst = arith.constant dense<0.000000e+00> : vector<256x640xf32>
    %3 = tpu.matmul %1, %2, %cst {dimension_numbers = #tpu.dot_dimension_numbers<[1], [0], [0], [1], [0, 0, 1, 1], [], []>} : vector<256x128xbf16>, vector<128x640xbf16>, vector<256x640xf32> -> vector<256x640xf32>
    %4 = vector.extract_strided_slice %3 {offsets = [0, 0], sizes = [256, 512], strides = [1, 1]} : vector<256x640xf32> to vector<256x512xf32>
    %5 = arith.truncf %4 : vector<256x512xf32> to vector<256x512xbf16>
    %c0_3 = arith.constant 0 : index
    %c0_4 = arith.constant 0 : index
    %6 = vector.load %arg4[%c0_3, %c0_4] : memref<256x512xbf16, #tpu.memory_space<vmem>>, vector<256x512xbf16>
    tpu.vector_store %arg4[%c0_3, %c0_4], %5 {strides = array<i32>} : memref<256x512xbf16, #tpu.memory_space<vmem>>, vector<256x512xbf16>,
    %7 = vector.extract_strided_slice %3 {offsets = [0, 512], sizes = [256, 128], strides = [1, 1]} : vector<256x640xf32> to vector<256x128xf32>
    %c0_5 = arith.constant 0 : index
    %c0_6 = arith.constant 0 : index
    %8 = vector.load %arg3[%c0_5, %c0_6] : memref<1x128xf32, #tpu.memory_space<vmem>>, vector<1x128xf32>
    %9 = vector.broadcast %8 : vector<1x128xf32> to vector<256x128xf32>
    %10 = arith.addf %7, %9 : vector<256x128xf32>
    %c0_7 = arith.constant 0 : index
    %c0_8 = arith.constant 0 : index
    %11 = vector.load %arg5[%c0_7, %c0_8] : memref<256x128xf32, #tpu.memory_space<vmem>>, vector<256x128xf32>
    tpu.vector_store %arg5[%c0_7, %c0_8], %10 {strides = array<i32>} : memref<256x128xf32, #tpu.memory_space<vmem>>, vector<256x128xf32>,
    return
  }
  func.func @transform_0(%arg0: i32) -> (i32, i32) {
    %c0_i32 = arith.constant 0 : i32
    %c0_i32_0 = arith.constant 0 : i32
    return %arg0, %c0_i32 : i32, i32
  }
  func.func @transform_1(%arg0: i32) -> (i32, i32) {
    %c0_i32 = arith.constant 0 : i32
    %c0_i32_0 = arith.constant 0 : i32
    %c0_i32_1 = arith.constant 0 : i32
    return %c0_i32, %c0_i32_0 : i32, i32
  }
  func.func @transform_2(%arg0: i32) -> (i32, i32) {
    %c0_i32 = arith.constant 0 : i32
    %c0_i32_0 = arith.constant 0 : i32
    %c0_i32_1 = arith.constant 0 : i32
    return %c0_i32, %c0_i32_0 : i32, i32
  }
  func.func @transform_3(%arg0: i32) -> (i32, i32) {
    %c0_i32 = arith.constant 0 : i32
    %c0_i32_0 = arith.constant 0 : i32
    return %arg0, %c0_i32 : i32, i32
  }
  func.func @transform_4(%arg0: i32) -> (i32, i32) {
    %c0_i32 = arith.constant 0 : i32
    %c0_i32_0 = arith.constant 0 : i32
    return %arg0, %c0_i32 : i32, i32
  }
}

</mosaic_0001>

<llo_original>
// kernel: tpu_custom_call.1
$region0: #{tpu_custom_call.1}
  #allocation0 [shape = 'u32[]', space=smem, size = 0x4, offset = 0x4, fixed_abs, tag = 'smem constant byte address 0x4 - core index']
  #allocation1 [shape = 'u32[144,128]{1,0:T(1,128)}', space=vmem, size = 0x12000, scoped, tag = 'internal scratch']
  %s0 = inlined_call_operand.hbm [shape: f32[256,128], index: 0, kind: input, shape index: {}]
  %s1 = inlined_call_operand.hbm [shape: bf16[128,640], index: 1, kind: input, shape index: {}]
  %s2 = inlined_call_operand.vmem [shape: f32[1,128], index: 2, kind: input, shape index: {}]
  %s3 = inlined_call_operand.hbm [shape: bf16[256,512], index: 3, kind: output, shape index: {0}]
  %s4 = inlined_call_operand.hbm [shape: f32[256,128], index: 4, kind: output, shape index: {1}]
  %5 = xla_tuple %s3, %s4
  %s6 = sld [smem:[#allocation0]]
  $region38: #{tpu_custom_call.1} parent=0
    _
  %s8 = ssub.s32 1, %s6
  %s9 = scalar_select 0, %s8, %s6
  $region1: #{tpu_custom_call.1} parent=0
    #allocation2 [shape = 'u8[131072]{0}', space=vmem, size = 0x20000, scoped, tag = 'input window, operand 0, single buffered']
    #allocation3 [shape = 's32[1]{0}', space=sflag, size = 0x4, scoped, tag = 'scoped memory for tpu_custom_call.1']
    #allocation4 [shape = 's32[1]{0}', space=sflag, size = 0x4, scoped, tag = 'scoped memory for tpu_custom_call.1']
    #allocation5 [shape = 'u8[163840]{0}', space=vmem, size = 0x28000, scoped, tag = 'input window, operand 1, single buffered']
    #allocation6 [shape = 's32[1]{0}', space=sflag, size = 0x4, scoped, tag = 'scoped memory for tpu_custom_call.1']
    #allocation7 [shape = 'u8[262144]{0}', space=vmem, size = 0x40000, scoped, tag = 'output window, operand 0, single buffered']
    #allocation8 [shape = 'u8[131072]{0}', space=vmem, size = 0x20000, scoped, tag = 'output window, operand 1, single buffered']
    #allocation9 [shape = 's32[1]{0}', space=sflag, size = 0x4, scoped, tag = 'scoped memory for tpu_custom_call.1']
    %10 = vsyncpa [#allocation3], 0
    %11 = vsyncpa [#allocation6], 0
    %12 = vsyncpa [#allocation4], 0
    %13 = vsyncpa [#allocation9], 0
    // Predicated region
    $region2: #{tpu_custom_call.1} parent=1 // pred_check
      _
    $region3: #{tpu_custom_call.1} parent=1 // pred_check_branch
      %15 = sbr.rel (0) target = $region5
    $region4: #{tpu_custom_call.1} parent=1 // pred_region
      %s17 = ssub.s32 4096, 4096
      %18 = vsyncadd [#allocation3], %s17
      %s19 = sshll.u32 [#allocation2], 4
      %s20 = int_to_ptr.vmem [resolvable:$true] %s19
      %25 = dma.hbm_to_vmem [thread:$0]  %s0, 4096, %s20, [#allocation3], 128, 128, 8
    $region5: #{tpu_custom_call.1} parent=1 // pred_fallthru
      _
    // Predicated region
    $region6: #{tpu_custom_call.1} parent=1 // pred_check
      _
    $region7: #{tpu_custom_call.1} parent=1 // pred_check_branch
      %27 = sbr.rel (0) target = $region9
    $region8: #{tpu_custom_call.1} parent=1 // pred_region
      %s29 = ssub.s32 5120, 5120
      %30 = vsyncadd [#allocation6], %s29
      %s31 = sshll.u32 [#allocation5], 4
      %s32 = int_to_ptr.vmem [resolvable:$true] %s31
      %37 = dma.hbm_to_vmem [thread:$0]  %s1, 5120, %s32, [#allocation6], 320, 320, 20
    $region9: #{tpu_custom_call.1} parent=1 // pred_fallthru
      _
    // Predicated region
    $region10: #{tpu_custom_call.1} parent=1 // pred_check
      _
    $region11: #{tpu_custom_call.1} parent=1 // pred_check_branch
      %39 = sbr.rel (0) target = $region13
    $region12: #{tpu_custom_call.1} parent=1 // pred_region
      _
    $region13: #{tpu_custom_call.1} parent=1 // pred_fallthru
      _
    // Predicated region
    $region14: #{tpu_custom_call.1} parent=1 // pred_check
      _
    $region15: #{tpu_custom_call.1} parent=1 // pred_check_branch
      %41 = sbr.rel (0) target = $region17
    $region16: #{tpu_custom_call.1} parent=1 // pred_region
      %42 = dma.done [#allocation3], 4096
    $region17: #{tpu_custom_call.1} parent=1 // pred_fallthru
      _
    // Predicated region
    $region18: #{tpu_custom_call.1} parent=1 // pred_check
      _
    $region19: #{tpu_custom_call.1} parent=1 // pred_check_branch
      %44 = sbr.rel (0) target = $region21
    $region20: #{tpu_custom_call.1} parent=1 // pred_region
      %45 = dma.done [#allocation6], 5120
    $region21: #{tpu_custom_call.1} parent=1 // pred_fallthru
      _
    %v47 = vld [vmem:[#allocation2] sm:$0xff]
    %v48 = vld [vmem:[#allocation2 + $0x8] sm:$0xff]
    %v49 = vld [vmem:[#allocation2 + $0x10] sm:$0xff]
    %v50 = vld [vmem:[#allocation2 + $0x18] sm:$0xff]
    %v51 = vld [vmem:[#allocation2 + $0x20] sm:$0xff]
    %v52 = vld [vmem:[#allocation2 + $0x28] sm:$0xff]
    %v53 = vld [vmem:[#allocation2 + $0x30] sm:$0xff]
    %v54 = vld [vmem:[#allocation2 + $0x38] sm:$0xff]
    %v55 = vld [vmem:[#allocation2 + $0x40] sm:$0xff]
    %v56 = vld [vmem:[#allocation2 + $0x48] sm:$0xff]
    %v57 = vld [vmem:[#allocation2 + $0x50] sm:$0xff]
    %v58 = vld [vmem:[#allocation2 + $0x58] sm:$0xff]
    %v59 = vld [vmem:[#allocation2 + $0x60] sm:$0xff]
    %v60 = vld [vmem:[#allocation2 + $0x68] sm:$0xff]
    %v61 = vld [vmem:[#allocation2 + $0x70] sm:$0xff]
    %v62 = vld [vmem:[#allocation2 + $0x78] sm:$0xff]
    %v63 = vld [vmem:[#allocation2 + $0x80] sm:$0xff]
    %v64 = vld [vmem:[#allocation2 + $0x88] sm:$0xff]
    %v65 = vld [vmem:[#allocation2 + $0x90] sm:$0xff]
    %v66 = vld [vmem:[#allocation2 + $0x98] sm:$0xff]
    %v67 = vld [vmem:[#allocation2 + $0xa0] sm:$0xff]
    %v68 = vld [vmem:[#allocation2 + $0xa8] sm:$0xff]
    %v69 = vld [vmem:[#allocation2 + $0xb0] sm:$0xff]
    %v70 = vld [vmem:[#allocation2 + $0xb8] sm:$0xff]
    %v71 = vld [vmem:[#allocation2 + $0xc0] sm:$0xff]
    %v72 = vld [vmem:[#allocation2 + $0xc8] sm:$0xff]
    %v73 = vld [vmem:[#allocation2 + $0xd0] sm:$0xff]
    %v74 = vld [vmem:[#allocation2 + $0xd8] sm:$0xff]
    %v75 = vld [vmem:[#allocation2 + $0xe0] sm:$0xff]
    %v76 = vld [vmem:[#allocation2 + $0xe8] sm:$0xff]
    %v77 = vld [vmem:[#allocation2 + $0xf0] sm:$0xff]
    %v78 = vld [vmem:[#allocation2 + $0xf8] sm:$0xff]
    %v79 = vpack.c.bf16 %v48, %v47
    %v80 = vpack.c.bf16 %v50, %v49
    %v81 = vpack.c.bf16 %v52, %v51
    %v82 = vpack.c.bf16 %v54, %v53
    %v83 = vpack.c.bf16 %v56, %v55
    %v84 = vpack.c.bf16 %v58, %v57
    %v85 = vpack.c.bf16 %v60, %v59
    %v86 = vpack.c.bf16 %v62, %v61
    %v87 = vpack.c.bf16 %v64, %v63
    %v88 = vpack.c.bf16 %v66, %v65
    %v89 = vpack.c.bf16 %v68, %v67
    %v90 = vpack.c.bf16 %v70, %v69
    %v91 = vpack.c.bf16 %v72, %v71
    %v92 = vpack.c.bf16 %v74, %v73
    %v93 = vpack.c.bf16 %v76, %v75
    %v94 = vpack.c.bf16 %v78, %v77
    %v95 = vld [vmem:[#allocation5] sm:$0xff]
    %v96 = vld [vmem:[#allocation5 + $0x8] sm:$0xff]
    %v97 = vld [vmem:[#allocation5 + $0x10] sm:$0xf]
    %v98 = vld [vmem:[#allocation5 + $0x14] sm:$0xff]
    %v99 = vld [vmem:[#allocation5 + $0x1c] sm:$0xff]
    %v100 = vld [vmem:[#allocation5 + $0x24] sm:$0xf]
    %v101 = vld [vmem:[#allocation5 + $0x28] sm:$0xff]
    %v102 = vld [vmem:[#allocation5 + $0x30] sm:$0xff]
    %v103 = vld [vmem:[#allocation5 + $0x38] sm:$0xf]
    %v104 = vld [vmem:[#allocation5 + $0x3c] sm:$0xff]
    %v105 = vld [vmem:[#allocation5 + $0x44] sm:$0xff]
    %v106 = vld [vmem:[#allocation5 + $0x4c] sm:$0xf]
    %v107 = vld [vmem:[#allocation5 + $0x50] sm:$0xff]
    %v108 = vld [vmem:[#allocation5 + $0x58] sm:$0xff]
    %v109 = vld [vmem:[#allocation5 + $0x60] sm:$0xf]
    %v110 = vld [vmem:[#allocation5 + $0x64] sm:$0xff]
    %v111 = vld [vmem:[#allocation5 + $0x6c] sm:$0xff]
    %v112 = vld [vmem:[#allocation5 + $0x74] sm:$0xf]
    %v113 = vld [vmem:[#allocation5 + $0x78] sm:$0xff]
    %v114 = vld [vmem:[#allocation5 + $0x80] sm:$0xff]
    %v115 = vld [vmem:[#allocation5 + $0x88] sm:$0xf]
    %v116 = vld [vmem:[#allocation5 + $0x8c] sm:$0xff]
    %v117 = vld [vmem:[#allocation5 + $0x94] sm:$0xff]
    %v118 = vld [vmem:[#allocation5 + $0x9c] sm:$0xf]
    %v119 = vld [vmem:[#allocation5 + $0xa0] sm:$0xff]
    %v120 = vld [vmem:[#allocation5 + $0xa8] sm:$0xff]
    %v121 = vld [vmem:[#allocation5 + $0xb0] sm:$0xf]
    %v122 = vld [vmem:[#allocation5 + $0xb4] sm:$0xff]
    %v123 = vld [vmem:[#allocation5 + $0xbc] sm:$0xff]
    %v124 = vld [vmem:[#allocation5 + $0xc4] sm:$0xf]
    %v125 = vld [vmem:[#allocation5 + $0xc8] sm:$0xff]
    %v126 = vld [vmem:[#allocation5 + $0xd0] sm:$0xff]
    %v127 = vld [vmem:[#allocation5 + $0xd8] sm:$0xf]
    %v128 = vld [vmem:[#allocation5 + $0xdc] sm:$0xff]
    %v129 = vld [vmem:[#allocation5 + $0xe4] sm:$0xff]
    %v130 = vld [vmem:[#allocation5 + $0xec] sm:$0xf]
    %v131 = vld [vmem:[#allocation5 + $0xf0] sm:$0xff]
    %v132 = vld [vmem:[#allocation5 + $0xf8] sm:$0xff]
    %v133 = vld [vmem:[#allocation5 + $0x100] sm:$0xf]
    %v134 = vld [vmem:[#allocation5 + $0x104] sm:$0xff]
    %v135 = vld [vmem:[#allocation5 + $0x10c] sm:$0xff]
    %v136 = vld [vmem:[#allocation5 + $0x114] sm:$0xf]
    %v137 = vld [vmem:[#allocation5 + $0x118] sm:$0xff]
    %v138 = vld [vmem:[#allocation5 + $0x120] sm:$0xff]
    %v139 = vld [vmem:[#allocation5 + $0x128] sm:$0xf]
    %v140 = vld [vmem:[#allocation5 + $0x12c] sm:$0xff]
    %v141 = vld [vmem:[#allocation5 + $0x134] sm:$0xff]
    %v142 = vld [vmem:[#allocation5 + $0x13c] sm:$0xf]
    %v191 = vunpack.c.l.b16 %v95
    %v192 = vunpack.c.h.b16 %v95
    %v193 = vunpack.c.l.b16 %v96
    %v194 = vunpack.c.h.b16 %v96
    %v195 = vunpack.c.l.b16 %v97
    %v196 = vunpack.c.l.b16 %v98
    %v197 = vunpack.c.h.b16 %v98
    %v198 = vunpack.c.l.b16 %v99
    %v199 = vunpack.c.h.b16 %v99
    %v200 = vunpack.c.l.b16 %v100
    %v201 = vunpack.c.l.b16 %v101
    %v202 = vunpack.c.h.b16 %v101
    %v203 = vunpack.c.l.b16 %v102
    %v204 = vunpack.c.h.b16 %v102
    %v205 = vunpack.c.l.b16 %v103
    %v206 = vunpack.c.l.b16 %v104
    %v207 = vunpack.c.h.b16 %v104
    %v208 = vunpack.c.l.b16 %v105
    %v209 = vunpack.c.h.b16 %v105
    %v210 = vunpack.c.l.b16 %v106
    %v211 = vunpack.c.l.b16 %v107
    %v212 = vunpack.c.h.b16 %v107
    %v213 = vunpack.c.l.b16 %v108
    %v214 = vunpack.c.h.b16 %v108
    %v215 = vunpack.c.l.b16 %v109
    %v216 = vunpack.c.l.b16 %v110
    %v217 = vunpack.c.h.b16 %v110
    %v218 = vunpack.c.l.b16 %v111
    %v219 = vunpack.c.h.b16 %v111
    %v220 = vunpack.c.l.b16 %v112
    %v221 = vunpack.c.l.b16 %v113
    %v222 = vunpack.c.h.b16 %v113
    %v223 = vunpack.c.l.b16 %v114
    %v224 = vunpack.c.h.b16 %v114
    %v225 = vunpack.c.l.b16 %v115
    %v226 = vunpack.c.l.b16 %v116
    %v227 = vunpack.c.h.b16 %v116
    %v228 = vunpack.c.l.b16 %v117
    %v229 = vunpack.c.h.b16 %v117
    %v230 = vunpack.c.l.b16 %v118
    %v231 = vunpack.c.l.b16 %v119
    %v232 = vunpack.c.h.b16 %v119
    %v233 = vunpack.c.l.b16 %v120
    %v234 = vunpack.c.h.b16 %v120
    %v235 = vunpack.c.l.b16 %v121
    %v236 = vunpack.c.l.b16 %v122
    %v237 = vunpack.c.h.b16 %v122
    %v238 = vunpack.c.l.b16 %v123
    %v239 = vunpack.c.h.b16 %v123
    %v240 = vunpack.c.l.b16 %v124
    %v241 = vunpack.c.l.b16 %v125
    %v242 = vunpack.c.h.b16 %v125
    %v243 = vunpack.c.l.b16 %v126
    %v244 = vunpack.c.h.b16 %v126
    %v245 = vunpack.c.l.b16 %v127
    %v246 = vunpack.c.l.b16 %v128
    %v247 = vunpack.c.h.b16 %v128
    %v248 = vunpack.c.l.b16 %v129
    %v249 = vunpack.c.h.b16 %v129
    %v250 = vunpack.c.l.b16 %v130
    %v251 = vunpack.c.l.b16 %v131
    %v252 = vunpack.c.h.b16 %v131
    %v253 = vunpack.c.l.b16 %v132
    %v254 = vunpack.c.h.b16 %v132
    %v255 = vunpack.c.l.b16 %v133
    %v256 = vunpack.c.l.b16 %v134
    %v257 = vunpack.c.h.b16 %v134
    %v258 = vunpack.c.l.b16 %v135
    %v259 = vunpack.c.h.b16 %v135
    %v260 = vunpack.c.l.b16 %v136
    %v261 = vunpack.c.l.b16 %v137
    %v262 = vunpack.c.h.b16 %v137
    %v263 = vunpack.c.l.b16 %v138
    %v264 = vunpack.c.h.b16 %v138
    %v265 = vunpack.c.l.b16 %v139
    %v266 = vunpack.c.l.b16 %v140
    %v267 = vunpack.c.h.b16 %v140
    %v268 = vunpack.c.l.b16 %v141
    %v269 = vunpack.c.h.b16 %v141
    %v270 = vunpack.c.l.b16 %v142
    %v271 = vpack.c.b16 %v196, %v191
    %v272 = vpack.c.b16 %v197, %v192
    %v273 = vpack.c.b16 %v198, %v193
    %v274 = vpack.c.b16 %v199, %v194
    %v275 = vpack.c.b16 %v200, %v195
    %v276 = vpack.c.b16 %v206, %v201
    %v277 = vpack.c.b16 %v207, %v202
    %v278 = vpack.c.b16 %v208, %v203
    %v279 = vpack.c.b16 %v209, %v204
    %v280 = vpack.c.b16 %v210, %v205
    %v281 = vpack.c.b16 %v216, %v211
    %v282 = vpack.c.b16 %v217, %v212
    %v283 = vpack.c.b16 %v218, %v213
    %v284 = vpack.c.b16 %v219, %v214
    %v285 = vpack.c.b16 %v220, %v215
    %v286 = vpack.c.b16 %v226, %v221
    %v287 = vpack.c.b16 %v227, %v222
    %v288 = vpack.c.b16 %v228, %v223
    %v289 = vpack.c.b16 %v229, %v224
    %v290 = vpack.c.b16 %v230, %v225
    %v291 = vpack.c.b16 %v236, %v231
    %v292 = vpack.c.b16 %v237, %v232
    %v293 = vpack.c.b16 %v238, %v233
    %v294 = vpack.c.b16 %v239, %v234
    %v295 = vpack.c.b16 %v240, %v235
    %v296 = vpack.c.b16 %v246, %v241
    %v297 = vpack.c.b16 %v247, %v242
    %v298 = vpack.c.b16 %v248, %v243
    %v299 = vpack.c.b16 %v249, %v244
    %v300 = vpack.c.b16 %v250, %v245
    %v301 = vpack.c.b16 %v256, %v251
    %v302 = vpack.c.b16 %v257, %v252
    %v303 = vpack.c.b16 %v258, %v253
    %v304 = vpack.c.b16 %v259, %v254
    %v305 = vpack.c.b16 %v260, %v255
    %v306 = vpack.c.b16 %v266, %v261
    %v307 = vpack.c.b16 %v267, %v262
    %v308 = vpack.c.b16 %v268, %v263
    %v309 = vpack.c.b16 %v269, %v264
    %v310 = vpack.c.b16 %v270, %v265
    %351 = vmatprep.subr.bf16.mxu0 %v307
    %352 = vmatpush1.bf16.msra.mxu0 %v306
    %353 = vmatprep.subr.bf16.mxu0 %v302
    %354 = vmatpush1.bf16.msra.mxu0 %v301
    %355 = vmatprep.subr.bf16.mxu0 %v297
    %356 = vmatpush1.bf16.msra.mxu0 %v296
    %357 = vmatprep.subr.bf16.mxu0 %v292
    %358 = vmatpush1.bf16.msra.mxu0 %v291
    %359 = vmatprep.subr.bf16.mxu0 %v287
    %360 = vmatpush1.bf16.msra.mxu0 %v286
    %361 = vmatprep.subr.bf16.mxu0 %v282
    %362 = vmatpush1.bf16.msra.mxu0 %v281
    %363 = vmatprep.subr.bf16.mxu0 %v277
    %364 = vmatpush1.bf16.msra.mxu0 %v276
    %365 = vmatprep.subr.bf16.mxu0 %v272
    %366 = vmatpush1.bf16.msra.mxu0 %v271
    %367 = vmatprep.subr.bf16.mxu0 0
    %368 = vmatpush2.bf16.msra.mxu0 0
    %369 = vmatprep.subr.bf16.mxu0 0
    %370 = vmatpush2.bf16.msra.mxu0 0
    %371 = vmatprep.subr.bf16.mxu0 0
    %372 = vmatpush2.bf16.msra.mxu0 0
    %373 = vmatprep.subr.bf16.mxu0 0
    %374 = vmatpush2.bf16.msra.mxu0 0
    %375 = vmatprep.subr.bf16.mxu0 0
    %376 = vmatpush2.bf16.msra.mxu0 0
    %377 = vmatprep.subr.bf16.mxu0 0
    %378 = vmatpush2.bf16.msra.mxu0 0
    %379 = vmatprep.subr.bf16.mxu0 0
    %380 = vmatpush2.bf16.msra.mxu0 0
    %381 = vmatprep.subr.bf16.mxu0 0
    %382 = vmatpush2.bf16.msra.mxu0 0
    %383 = vmatprep.mubr.bf16.mxu0 0
    %384 = vmatmul.mubr.bf16.gmra.mxu0 %v79
    %v385 = vpop.f32.mrf.mxu0
    %v386 = vadd.f32 0.0, %v385
    %v387 = vpop.f32.mrf.mxu0
    %v388 = vadd.f32 0.0, %v387
    %v389 = vpop.f32.mrf.mxu0
    %v390 = vadd.f32 0.0, %v389
    %v391 = vpop.f32.mrf.mxu0
    %v392 = vadd.f32 0.0, %v391
    %393 = vmatprep.mubr.bf16.mxu0 0
    %394 = vmatmul.mubr.bf16.gmra.mxu0 %v80
    %v395 = vpop.f32.mrf.mxu0
    %v396 = vadd.f32 0.0, %v395
    %v397 = vpop.f32.mrf.mxu0
    %v398 = vadd.f32 0.0, %v397
    %v399 = vpop.f32.mrf.mxu0
    %v400 = vadd.f32 0.0, %v399
    %v401 = vpop.f32.mrf.mxu0
    %v402 = vadd.f32 0.0, %v401
    %403 = vmatprep.mubr.bf16.mxu0 0
    %404 = vmatmul.mubr.bf16.gmra.mxu0 %v81
    %v405 = vpop.f32.mrf.mxu0
    %v406 = vadd.f32 0.0, %v405
    %v407 = vpop.f32.mrf.mxu0
    %v408 = vadd.f32 0.0, %v407
    %v409 = vpop.f32.mrf.mxu0
    %v410 = vadd.f32 0.0, %v409
    %v411 = vpop.f32.mrf.mxu0
    %v412 = vadd.f32 0.0, %v411
    %413 = vmatprep.mubr.bf16.mxu0 0
    %414 = vmatmul.mubr.bf16.gmra.mxu0 %v82
    %v415 = vpop.f32.mrf.mxu0
    %v416 = vadd.f32 0.0, %v415
    %v417 = vpop.f32.mrf.mxu0
    %v418 = vadd.f32 0.0, %v417
    %v419 = vpop.f32.mrf.mxu0
    %v420 = vadd.f32 0.0, %v419
    %v421 = vpop.f32.mrf.mxu0
    %v422 = vadd.f32 0.0, %v421
    %423 = vmatprep.mubr.bf16.mxu0 0
    %424 = vmatmul.mubr.bf16.gmra.mxu0 %v83
    %v425 = vpop.f32.mrf.mxu0
    %v426 = vadd.f32 0.0, %v425
    %v427 = vpop.f32.mrf.mxu0
    %v428 = vadd.f32 0.0, %v427
    %v429 = vpop.f32.mrf.mxu0
    %v430 = vadd.f32 0.0, %v429
    %v431 = vpop.f32.mrf.mxu0
    %v432 = vadd.f32 0.0, %v431
    %433 = vmatprep.mubr.bf16.mxu0 0
    %434 = vmatmul.mubr.bf16.gmra.mxu0 %v84
    %v435 = vpop.f32.mrf.mxu0
    %v436 = vadd.f32 0.0, %v435
    %v437 = vpop.f32.mrf.mxu0
    %v438 = vadd.f32 0.0, %v437
    %v439 = vpop.f32.mrf.mxu0
    %v440 = vadd.f32 0.0, %v439
    %v441 = vpop.f32.mrf.mxu0
    %v442 = vadd.f32 0.0, %v441
    %443 = vmatprep.mubr.bf16.mxu0 0
    %444 = vmatmul.mubr.bf16.gmra.mxu0 %v85
    %v445 = vpop.f32.mrf.mxu0
    %v446 = vadd.f32 0.0, %v445
    %v447 = vpop.f32.mrf.mxu0
    %v448 = vadd.f32 0.0, %v447
    %v449 = vpop.f32.mrf.mxu0
    %v450 = vadd.f32 0.0, %v449
    %v451 = vpop.f32.mrf.mxu0
    %v452 = vadd.f32 0.0, %v451
    %453 = vmatprep.mubr.bf16.mxu0 0
    %454 = vmatmul.mubr.bf16.gmra.mxu0 %v86
    %v455 = vpop.f32.mrf.mxu0
    %v456 = vadd.f32 0.0, %v455
    %v457 = vpop.f32.mrf.mxu0
    %v458 = vadd.f32 0.0, %v457
    %v459 = vpop.f32.mrf.mxu0
    %v460 = vadd.f32 0.0, %v459
    %v461 = vpop.f32.mrf.mxu0
    %v462 = vadd.f32 0.0, %v461
    %463 = vmatprep.mubr.bf16.mxu0 0
    %464 = vmatmul.mubr.bf16.gmra.mxu0 %v87
    %v465 = vpop.f32.mrf.mxu0
    %v466 = vadd.f32 0.0, %v465
    %v467 = vpop.f32.mrf.mxu0
    %v468 = vadd.f32 0.0, %v467
    %v469 = vpop.f32.mrf.mxu0
    %v470 = vadd.f32 0.0, %v469
    %v471 = vpop.f32.mrf.mxu0
    %v472 = vadd.f32 0.0, %v471
    %473 = vmatprep.mubr.bf16.mxu0 0
    %474 = vmatmul.mubr.bf16.gmra.mxu0 %v88
    %v475 = vpop.f32.mrf.mxu0
    %v476 = vadd.f32 0.0, %v475
    %v477 = vpop.f32.mrf.mxu0
    %v478 = vadd.f32 0.0, %v477
    %v479 = vpop.f32.mrf.mxu0
    %v480 = vadd.f32 0.0, %v479
    %v481 = vpop.f32.mrf.mxu0
    %v482 = vadd.f32 0.0, %v481
    %483 = vmatprep.mubr.bf16.mxu0 0
    %484 = vmatmul.mubr.bf16.gmra.mxu0 %v89
    %v485 = vpop.f32.mrf.mxu0
    %v486 = vadd.f32 0.0, %v485
    %v487 = vpop.f32.mrf.mxu0
    %v488 = vadd.f32 0.0, %v487
    %v489 = vpop.f32.mrf.mxu0
    %v490 = vadd.f32 0.0, %v489
    %v491 = vpop.f32.mrf.mxu0
    %v492 = vadd.f32 0.0, %v491
    %493 = vmatprep.mubr.bf16.mxu0 0
    %494 = vmatmul.mubr.bf16.gmra.mxu0 %v90
    %v495 = vpop.f32.mrf.mxu0
    %v496 = vadd.f32 0.0, %v495
    %v497 = vpop.f32.mrf.mxu0
    %v498 = vadd.f32 0.0, %v497
    %v499 = vpop.f32.mrf.mxu0
    %v500 = vadd.f32 0.0, %v499
    %v501 = vpop.f32.mrf.mxu0
    %v502 = vadd.f32 0.0, %v501
    %503 = vmatprep.mubr.bf16.mxu0 0
    %504 = vmatmul.mubr.bf16.gmra.mxu0 %v91
    %v505 = vpop.f32.mrf.mxu0
    %v506 = vadd.f32 0.0, %v505
    %v507 = vpop.f32.mrf.mxu0
    %v508 = vadd.f32 0.0, %v507
    %v509 = vpop.f32.mrf.mxu0
    %v510 = vadd.f32 0.0, %v509
    %v511 = vpop.f32.mrf.mxu0
    %v512 = vadd.f32 0.0, %v511
    %513 = vmatprep.mubr.bf16.mxu0 0
    %514 = vmatmul.mubr.bf16.gmra.mxu0 %v92
    %v515 = vpop.f32.mrf.mxu0
    %v516 = vadd.f32 0.0, %v515
    %v517 = vpop.f32.mrf.mxu0
    %v518 = vadd.f32 0.0, %v517
    %v519 = vpop.f32.mrf.mxu0
    %v520 = vadd.f32 0.0, %v519
    %v521 = vpop.f32.mrf.mxu0
    %v522 = vadd.f32 0.0, %v521
    %523 = vmatprep.mubr.bf16.mxu0 0
    %524 = vmatmul.mubr.bf16.gmra.mxu0 %v93
    %v525 = vpop.f32.mrf.mxu0
    %v526 = vadd.f32 0.0, %v525
    %v527 = vpop.f32.mrf.mxu0
    %v528 = vadd.f32 0.0, %v527
    %v529 = vpop.f32.mrf.mxu0
    %v530 = vadd.f32 0.0, %v529
    %v531 = vpop.f32.mrf.mxu0
    %v532 = vadd.f32 0.0, %v531
    %533 = vmatprep.mubr.bf16.mxu0 0
    %534 = vmatmul.mubr.bf16.gmra.mxu0 %v94
    %v535 = vpop.f32.mrf.mxu0
    %v536 = vadd.f32 0.0, %v535
    %v537 = vpop.f32.mrf.mxu0
    %v538 = vadd.f32 0.0, %v537
    %v539 = vpop.f32.mrf.mxu0
    %v540 = vadd.f32 0.0, %v539
    %v541 = vpop.f32.mrf.mxu0
    %v542 = vadd.f32 0.0, %v541
    %543 = vdwg.mxu0
    %544 = vmatprep.subr.bf16.mxu0 %v309
    %545 = vmatpush1.bf16.msra.mxu0 %v308
    %546 = vmatprep.subr.bf16.mxu0 %v304
    %547 = vmatpush1.bf16.msra.mxu0 %v303
    %548 = vmatprep.subr.bf16.mxu0 %v299
    %549 = vmatpush1.bf16.msra.mxu0 %v298
    %550 = vmatprep.subr.bf16.mxu0 %v294
    %551 = vmatpush1.bf16.msra.mxu0 %v293
    %552 = vmatprep.subr.bf16.mxu0 %v289
    %553 = vmatpush1.bf16.msra.mxu0 %v288
    %554 = vmatprep.subr.bf16.mxu0 %v284
    %555 = vmatpush1.bf16.msra.mxu0 %v283
    %556 = vmatprep.subr.bf16.mxu0 %v279
    %557 = vmatpush1.bf16.msra.mxu0 %v278
    %558 = vmatprep.subr.bf16.mxu0 %v274
    %559 = vmatpush1.bf16.msra.mxu0 %v273
    %560 = vmatprep.subr.bf16.mxu0 0
    %561 = vmatpush2.bf16.msra.mxu0 0
    %562 = vmatprep.subr.bf16.mxu0 0
    %563 = vmatpush2.bf16.msra.mxu0 0
    %564 = vmatprep.subr.bf16.mxu0 0
    %565 = vmatpush2.bf16.msra.mxu0 0
    %566 = vmatprep.subr.bf16.mxu0 0
    %567 = vmatpush2.bf16.msra.mxu0 0
    %568 = vmatprep.subr.bf16.mxu0 0
    %569 = vmatpush2.bf16.msra.mxu0 0
    %570 = vmatprep.subr.bf16.mxu0 0
    %571 = vmatpush2.bf16.msra.mxu0 0
    %572 = vmatprep.subr.bf16.mxu0 0
    %573 = vmatpush2.bf16.msra.mxu0 0
    %574 = vmatprep.subr.bf16.mxu0 0
    %575 = vmatpush2.bf16.msra.mxu0 0
    %576 = vmatprep.mubr.bf16.mxu0 0
    %577 = vmatmul.mubr.bf16.gmra.mxu0 %v79
    %v578 = vpop.f32.mrf.mxu0
    %v579 = vadd.f32 0.0, %v578
    %v580 = vpop.f32.mrf.mxu0
    %v581 = vadd.f32 0.0, %v580
    %v582 = vpop.f32.mrf.mxu0
    %v583 = vadd.f32 0.0, %v582
    %v584 = vpop.f32.mrf.mxu0
    %v585 = vadd.f32 0.0, %v584
    %586 = vmatprep.mubr.bf16.mxu0 0
    %587 = vmatmul.mubr.bf16.gmra.mxu0 %v80
    %v588 = vpop.f32.mrf.mxu0
    %v589 = vadd.f32 0.0, %v588
    %v590 = vpop.f32.mrf.mxu0
    %v591 = vadd.f32 0.0, %v590
    %v592 = vpop.f32.mrf.mxu0
    %v593 = vadd.f32 0.0, %v592
    %v594 = vpop.f32.mrf.mxu0
    %v595 = vadd.f32 0.0, %v594
    %596 = vmatprep.mubr.bf16.mxu0 0
    %597 = vmatmul.mubr.bf16.gmra.mxu0 %v81
    %v598 = vpop.f32.mrf.mxu0
    %v599 = vadd.f32 0.0, %v598
    %v600 = vpop.f32.mrf.mxu0
    %v601 = vadd.f32 0.0, %v600
    %v602 = vpop.f32.mrf.mxu0
    %v603 = vadd.f32 0.0, %v602
    %v604 = vpop.f32.mrf.mxu0
    %v605 = vadd.f32 0.0, %v604
    %606 = vmatprep.mubr.bf16.mxu0 0
    %607 = vmatmul.mubr.bf16.gmra.mxu0 %v82
    %v608 = vpop.f32.mrf.mxu0
    %v609 = vadd.f32 0.0, %v608
    %v610 = vpop.f32.mrf.mxu0
    %v611 = vadd.f32 0.0, %v610
    %v612 = vpop.f32.mrf.mxu0
    %v613 = vadd.f32 0.0, %v612
    %v614 = vpop.f32.mrf.mxu0
    %v615 = vadd.f32 0.0, %v614
    %616 = vmatprep.mubr.bf16.mxu0 0
    %617 = vmatmul.mubr.bf16.gmra.mxu0 %v83
    %v618 = vpop.f32.mrf.mxu0
    %v619 = vadd.f32 0.0, %v618
    %v620 = vpop.f32.mrf.mxu0
    %v621 = vadd.f32 0.0, %v620
    %v622 = vpop.f32.mrf.mxu0
    %v623 = vadd.f32 0.0, %v622
    %v624 = vpop.f32.mrf.mxu0
    %v625 = vadd.f32 0.0, %v624
    %626 = vmatprep.mubr.bf16.mxu0 0
    %627 = vmatmul.mubr.bf16.gmra.mxu0 %v84
    %v628 = vpop.f32.mrf.mxu0
    %v629 = vadd.f32 0.0, %v628
    %v630 = vpop.f32.mrf.mxu0
    %v631 = vadd.f32 0.0, %v630
    %v632 = vpop.f32.mrf.mxu0
    %v633 = vadd.f32 0.0, %v632
    %v634 = vpop.f32.mrf.mxu0
    %v635 = vadd.f32 0.0, %v634
    %636 = vmatprep.mubr.bf16.mxu0 0
    %637 = vmatmul.mubr.bf16.gmra.mxu0 %v85
    %v638 = vpop.f32.mrf.mxu0
    %v639 = vadd.f32 0.0, %v638
    %v640 = vpop.f32.mrf.mxu0
    %v641 = vadd.f32 0.0, %v640
    %v642 = vpop.f32.mrf.mxu0
    %v643 = vadd.f32 0.0, %v642
    %v644 = vpop.f32.mrf.mxu0
    %v645 = vadd.f32 0.0, %v644
    %646 = vmatprep.mubr.bf16.mxu0 0
    %647 = vmatmul.mubr.bf16.gmra.mxu0 %v86
    %v648 = vpop.f32.mrf.mxu0
    %v649 = vadd.f32 0.0, %v648
    %v650 = vpop.f32.mrf.mxu0
    %v651 = vadd.f32 0.0, %v650
    %v652 = vpop.f32.mrf.mxu0
    %v653 = vadd.f32 0.0, %v652
    %v654 = vpop.f32.mrf.mxu0
    %v655 = vadd.f32 0.0, %v654
    %656 = vmatprep.mubr.bf16.mxu0 0
    %657 = vmatmul.mubr.bf16.gmra.mxu0 %v87
    %v658 = vpop.f32.mrf.mxu0
    %v659 = vadd.f32 0.0, %v658
    %v660 = vpop.f32.mrf.mxu0
    %v661 = vadd.f32 0.0, %v660
    %v662 = vpop.f32.mrf.mxu0
    %v663 = vadd.f32 0.0, %v662
    %v664 = vpop.f32.mrf.mxu0
    %v665 = vadd.f32 0.0, %v664
    %666 = vmatprep.mubr.bf16.mxu0 0
    %667 = vmatmul.mubr.bf16.gmra.mxu0 %v88
    %v668 = vpop.f32.mrf.mxu0
    %v669 = vadd.f32 0.0, %v668
    %v670 = vpop.f32.mrf.mxu0
    %v671 = vadd.f32 0.0, %v670
    %v672 = vpop.f32.mrf.mxu0
    %v673 = vadd.f32 0.0, %v672
    %v674 = vpop.f32.mrf.mxu0
    %v675 = vadd.f32 0.0, %v674
    %676 = vmatprep.mubr.bf16.mxu0 0
    %677 = vmatmul.mubr.bf16.gmra.mxu0 %v89
    %v678 = vpop.f32.mrf.mxu0
    %v679 = vadd.f32 0.0, %v678
    %v680 = vpop.f32.mrf.mxu0
    %v681 = vadd.f32 0.0, %v680
    %v682 = vpop.f32.mrf.mxu0
    %v683 = vadd.f32 0.0, %v682
    %v684 = vpop.f32.mrf.mxu0
    %v685 = vadd.f32 0.0, %v684
    %686 = vmatprep.mubr.bf16.mxu0 0
    %687 = vmatmul.mubr.bf16.gmra.mxu0 %v90
    %v688 = vpop.f32.mrf.mxu0
    %v689 = vadd.f32 0.0, %v688
    %v690 = vpop.f32.mrf.mxu0
    %v691 = vadd.f32 0.0, %v690
    %v692 = vpop.f32.mrf.mxu0
    %v693 = vadd.f32 0.0, %v692
    %v694 = vpop.f32.mrf.mxu0
    %v695 = vadd.f32 0.0, %v694
    %696 = vmatprep.mubr.bf16.mxu0 0
    %697 = vmatmul.mubr.bf16.gmra.mxu0 %v91
    %v698 = vpop.f32.mrf.mxu0
    %v699 = vadd.f32 0.0, %v698
    %v700 = vpop.f32.mrf.mxu0
    %v701 = vadd.f32 0.0, %v700
    %v702 = vpop.f32.mrf.mxu0
    %v703 = vadd.f32 0.0, %v702
    %v704 = vpop.f32.mrf.mxu0
    %v705 = vadd.f32 0.0, %v704
    %706 = vmatprep.mubr.bf16.mxu0 0
    %707 = vmatmul.mubr.bf16.gmra.mxu0 %v92
    %v708 = vpop.f32.mrf.mxu0
    %v709 = vadd.f32 0.0, %v708
    %v710 = vpop.f32.mrf.mxu0
    %v711 = vadd.f32 0.0, %v710
    %v712 = vpop.f32.mrf.mxu0
    %v713 = vadd.f32 0.0, %v712
    %v714 = vpop.f32.mrf.mxu0
    %v715 = vadd.f32 0.0, %v714
    %716 = vmatprep.mubr.bf16.mxu0 0
    %717 = vmatmul.mubr.bf16.gmra.mxu0 %v93
    %v718 = vpop.f32.mrf.mxu0
    %v719 = vadd.f32 0.0, %v718
    %v720 = vpop.f32.mrf.mxu0
    %v721 = vadd.f32 0.0, %v720
    %v722 = vpop.f32.mrf.mxu0
    %v723 = vadd.f32 0.0, %v722
    %v724 = vpop.f32.mrf.mxu0
    %v725 = vadd.f32 0.0, %v724
    %726 = vmatprep.mubr.bf16.mxu0 0
    %727 = vmatmul.mubr.bf16.gmra.mxu0 %v94
    %v728 = vpop.f32.mrf.mxu0
    %v729 = vadd.f32 0.0, %v728
    %v730 = vpop.f32.mrf.mxu0
    %v731 = vadd.f32 0.0, %v730
    %v732 = vpop.f32.mrf.mxu0
    %v733 = vadd.f32 0.0, %v732
    %v734 = vpop.f32.mrf.mxu0
    %v735 = vadd.f32 0.0, %v734
    %736 = vdwg.mxu0
    %737 = vmatprep.subr.bf16.mxu0 0
    %738 = vmatpush1.bf16.msra.mxu0 %v310
    %739 = vmatprep.subr.bf16.mxu0 0
    %740 = vmatpush1.bf16.msra.mxu0 %v305
    %741 = vmatprep.subr.bf16.mxu0 0
    %742 = vmatpush1.bf16.msra.mxu0 %v300
    %743 = vmatprep.subr.bf16.mxu0 0
    %744 = vmatpush1.bf16.msra.mxu0 %v295
    %745 = vmatprep.subr.bf16.mxu0 0
    %746 = vmatpush1.bf16.msra.mxu0 %v290
    %747 = vmatprep.subr.bf16.mxu0 0
    %748 = vmatpush1.bf16.msra.mxu0 %v285
    %749 = vmatprep.subr.bf16.mxu0 0
    %750 = vmatpush1.bf16.msra.mxu0 %v280
    %751 = vmatprep.subr.bf16.mxu0 0
    %752 = vmatpush1.bf16.msra.mxu0 %v275
    %753 = vmatprep.subr.bf16.mxu0 0
    %754 = vmatpush2.bf16.msra.mxu0 0
    %755 = vmatprep.subr.bf16.mxu0 0
    %756 = vmatpush2.bf16.msra.mxu0 0
    %757 = vmatprep.subr.bf16.mxu0 0
    %758 = vmatpush2.bf16.msra.mxu0 0
    %759 = vmatprep.subr.bf16.mxu0 0
    %760 = vmatpush2.bf16.msra.mxu0 0
    %761 = vmatprep.subr.bf16.mxu0 0
    %762 = vmatpush2.bf16.msra.mxu0 0
    %763 = vmatprep.subr.bf16.mxu0 0
    %764 = vmatpush2.bf16.msra.mxu0 0
    %765 = vmatprep.subr.bf16.mxu0 0
    %766 = vmatpush2.bf16.msra.mxu0 0
    %767 = vmatprep.subr.bf16.mxu0 0
    %768 = vmatpush2.bf16.msra.mxu0 0
    %769 = vmatprep.mubr.bf16.mxu0 0
    %770 = vmatmul.mubr.bf16.gmra.mxu0 %v79
    %v771 = vpop.f32.mrf.mxu0
    %v772 = vadd.f32 0.0, %v771
    %v773 = vpop.f32.mrf.mxu0
    %v774 = vpop.f32.mrf.mxu0
    %v775 = vadd.f32 0.0, %v774
    %v776 = vpop.f32.mrf.mxu0
    %777 = vmatprep.mubr.bf16.mxu0 0
    %778 = vmatmul.mubr.bf16.gmra.mxu0 %v80
    %v779 = vpop.f32.mrf.mxu0
    %v780 = vadd.f32 0.0, %v779
    %v781 = vpop.f32.mrf.mxu0
    %v782 = vpop.f32.mrf.mxu0
    %v783 = vadd.f32 0.0, %v782
    %v784 = vpop.f32.mrf.mxu0
    %785 = vmatprep.mubr.bf16.mxu0 0
    %786 = vmatmul.mubr.bf16.gmra.mxu0 %v81
    %v787 = vpop.f32.mrf.mxu0
    %v788 = vadd.f32 0.0, %v787
    %v789 = vpop.f32.mrf.mxu0
    %v790 = vpop.f32.mrf.mxu0
    %v791 = vadd.f32 0.0, %v790
    %v792 = vpop.f32.mrf.mxu0
    %793 = vmatprep.mubr.bf16.mxu0 0
    %794 = vmatmul.mubr.bf16.gmra.mxu0 %v82
    %v795 = vpop.f32.mrf.mxu0
    %v796 = vadd.f32 0.0, %v795
    %v797 = vpop.f32.mrf.mxu0
    %v798 = vpop.f32.mrf.mxu0
    %v799 = vadd.f32 0.0, %v798
    %v800 = vpop.f32.mrf.mxu0
    %801 = vmatprep.mubr.bf16.mxu0 0
    %802 = vmatmul.mubr.bf16.gmra.mxu0 %v83
    %v803 = vpop.f32.mrf.mxu0
    %v804 = vadd.f32 0.0, %v803
    %v805 = vpop.f32.mrf.mxu0
    %v806 = vpop.f32.mrf.mxu0
    %v807 = vadd.f32 0.0, %v806
    %v808 = vpop.f32.mrf.mxu0
    %809 = vmatprep.mubr.bf16.mxu0 0
    %810 = vmatmul.mubr.bf16.gmra.mxu0 %v84
    %v811 = vpop.f32.mrf.mxu0
    %v812 = vadd.f32 0.0, %v811
    %v813 = vpop.f32.mrf.mxu0
    %v814 = vpop.f32.mrf.mxu0
    %v815 = vadd.f32 0.0, %v814
    %v816 = vpop.f32.mrf.mxu0
    %817 = vmatprep.mubr.bf16.mxu0 0
    %818 = vmatmul.mubr.bf16.gmra.mxu0 %v85
    %v819 = vpop.f32.mrf.mxu0
    %v820 = vadd.f32 0.0, %v819
    %v821 = vpop.f32.mrf.mxu0
    %v822 = vpop.f32.mrf.mxu0
    %v823 = vadd.f32 0.0, %v822
    %v824 = vpop.f32.mrf.mxu0
    %825 = vmatprep.mubr.bf16.mxu0 0
    %826 = vmatmul.mubr.bf16.gmra.mxu0 %v86
    %v827 = vpop.f32.mrf.mxu0
    %v828 = vadd.f32 0.0, %v827
    %v829 = vpop.f32.mrf.mxu0
    %v830 = vpop.f32.mrf.mxu0
    %v831 = vadd.f32 0.0, %v830
    %v832 = vpop.f32.mrf.mxu0
    %833 = vmatprep.mubr.bf16.mxu0 0
    %834 = vmatmul.mubr.bf16.gmra.mxu0 %v87
    %v835 = vpop.f32.mrf.mxu0
    %v836 = vadd.f32 0.0, %v835
    %v837 = vpop.f32.mrf.mxu0
    %v838 = vpop.f32.mrf.mxu0
    %v839 = vadd.f32 0.0, %v838
    %v840 = vpop.f32.mrf.mxu0
    %841 = vmatprep.mubr.bf16.mxu0 0
    %842 = vmatmul.mubr.bf16.gmra.mxu0 %v88
    %v843 = vpop.f32.mrf.mxu0
    %v844 = vadd.f32 0.0, %v843
    %v845 = vpop.f32.mrf.mxu0
    %v846 = vpop.f32.mrf.mxu0
    %v847 = vadd.f32 0.0, %v846
    %v848 = vpop.f32.mrf.mxu0
    %849 = vmatprep.mubr.bf16.mxu0 0
    %850 = vmatmul.mubr.bf16.gmra.mxu0 %v89
    %v851 = vpop.f32.mrf.mxu0
    %v852 = vadd.f32 0.0, %v851
    %v853 = vpop.f32.mrf.mxu0
    %v854 = vpop.f32.mrf.mxu0
    %v855 = vadd.f32 0.0, %v854
    %v856 = vpop.f32.mrf.mxu0
    %857 = vmatprep.mubr.bf16.mxu0 0
    %858 = vmatmul.mubr.bf16.gmra.mxu0 %v90
    %v859 = vpop.f32.mrf.mxu0
    %v860 = vadd.f32 0.0, %v859
    %v861 = vpop.f32.mrf.mxu0
    %v862 = vpop.f32.mrf.mxu0
    %v863 = vadd.f32 0.0, %v862
    %v864 = vpop.f32.mrf.mxu0
    %865 = vmatprep.mubr.bf16.mxu0 0
    %866 = vmatmul.mubr.bf16.gmra.mxu0 %v91
    %v867 = vpop.f32.mrf.mxu0
    %v868 = vadd.f32 0.0, %v867
    %v869 = vpop.f32.mrf.mxu0
    %v870 = vpop.f32.mrf.mxu0
    %v871 = vadd.f32 0.0, %v870
    %v872 = vpop.f32.mrf.mxu0
    %873 = vmatprep.mubr.bf16.mxu0 0
    %874 = vmatmul.mubr.bf16.gmra.mxu0 %v92
    %v875 = vpop.f32.mrf.mxu0
    %v876 = vadd.f32 0.0, %v875
    %v877 = vpop.f32.mrf.mxu0
    %v878 = vpop.f32.mrf.mxu0
    %v879 = vadd.f32 0.0, %v878
    %v880 = vpop.f32.mrf.mxu0
    %881 = vmatprep.mubr.bf16.mxu0 0
    %882 = vmatmul.mubr.bf16.gmra.mxu0 %v93
    %v883 = vpop.f32.mrf.mxu0
    %v884 = vadd.f32 0.0, %v883
    %v885 = vpop.f32.mrf.mxu0
    %v886 = vpop.f32.mrf.mxu0
    %v887 = vadd.f32 0.0, %v886
    %v888 = vpop.f32.mrf.mxu0
    %889 = vmatprep.mubr.bf16.mxu0 0
    %890 = vmatmul.mubr.bf16.gmra.mxu0 %v94
    %v891 = vpop.f32.mrf.mxu0
    %v892 = vadd.f32 0.0, %v891
    %v893 = vpop.f32.mrf.mxu0
    %v894 = vpop.f32.mrf.mxu0
    %v895 = vadd.f32 0.0, %v894
    %v896 = vpop.f32.mrf.mxu0
    %897 = vdwg.mxu0
    %v898 = vpack.c.bf16 %v390, %v386
    %v899 = vpack.c.bf16 %v392, %v388
    %v900 = vpack.c.bf16 %v583, %v579
    %v901 = vpack.c.bf16 %v585, %v581
    %v902 = vpack.c.bf16 %v400, %v396
    %v903 = vpack.c.bf16 %v402, %v398
    %v904 = vpack.c.bf16 %v593, %v589
    %v905 = vpack.c.bf16 %v595, %v591
    %v906 = vpack.c.bf16 %v410, %v406
    %v907 = vpack.c.bf16 %v412, %v408
    %v908 = vpack.c.bf16 %v603, %v599
    %v909 = vpack.c.bf16 %v605, %v601
    %v910 = vpack.c.bf16 %v420, %v416
    %v911 = vpack.c.bf16 %v422, %v418
    %v912 = vpack.c.bf16 %v613, %v609
    %v913 = vpack.c.bf16 %v615, %v611
    %v914 = vpack.c.bf16 %v430, %v426
    %v915 = vpack.c.bf16 %v432, %v428
    %v916 = vpack.c.bf16 %v623, %v619
    %v917 = vpack.c.bf16 %v625, %v621
    %v918 = vpack.c.bf16 %v440, %v436
    %v919 = vpack.c.bf16 %v442, %v438
    %v920 = vpack.c.bf16 %v633, %v629
    %v921 = vpack.c.bf16 %v635, %v631
    %v922 = vpack.c.bf16 %v450, %v446
    %v923 = vpack.c.bf16 %v452, %v448
    %v924 = vpack.c.bf16 %v643, %v639
    %v925 = vpack.c.bf16 %v645, %v641
    %v926 = vpack.c.bf16 %v460, %v456
    %v927 = vpack.c.bf16 %v462, %v458
    %v928 = vpack.c.bf16 %v653, %v649
    %v929 = vpack.c.bf16 %v655, %v651
    %v930 = vpack.c.bf16 %v470, %v466
    %v931 = vpack.c.bf16 %v472, %v468
    %v932 = vpack.c.bf16 %v663, %v659
    %v933 = vpack.c.bf16 %v665, %v661
    %v934 = vpack.c.bf16 %v480, %v476
    %v935 = vpack.c.bf16 %v482, %v478
    %v936 = vpack.c.bf16 %v673, %v669
    %v937 = vpack.c.bf16 %v675, %v671
    %v938 = vpack.c.bf16 %v490, %v486
    %v939 = vpack.c.bf16 %v492, %v488
    %v940 = vpack.c.bf16 %v683, %v679
    %v941 = vpack.c.bf16 %v685, %v681
    %v942 = vpack.c.bf16 %v500, %v496
    %v943 = vpack.c.bf16 %v502, %v498
    %v944 = vpack.c.bf16 %v693, %v689
    %v945 = vpack.c.bf16 %v695, %v691
    %v946 = vpack.c.bf16 %v510, %v506
    %v947 = vpack.c.bf16 %v512, %v508
    %v948 = vpack.c.bf16 %v703, %v699
    %v949 = vpack.c.bf16 %v705, %v701
    %v950 = vpack.c.bf16 %v520, %v516
    %v951 = vpack.c.bf16 %v522, %v518
    %v952 = vpack.c.bf16 %v713, %v709
    %v953 = vpack.c.bf16 %v715, %v711
    %v954 = vpack.c.bf16 %v530, %v526
    %v955 = vpack.c.bf16 %v532, %v528
    %v956 = vpack.c.bf16 %v723, %v719
    %v957 = vpack.c.bf16 %v725, %v721
    %v958 = vpack.c.bf16 %v540, %v536
    %v959 = vpack.c.bf16 %v542, %v538
    %v960 = vpack.c.bf16 %v733, %v729
    %v961 = vpack.c.bf16 %v735, %v731
    %v1026 = vunpack.c.l.b16 %v898
    %v1027 = vunpack.c.l.b16 %v899
    %v1028 = vunpack.c.l.b16 %v900
    %v1029 = vunpack.c.l.b16 %v901
    %v1030 = vunpack.c.h.b16 %v898
    %v1031 = vunpack.c.h.b16 %v899
    %v1032 = vunpack.c.h.b16 %v900
    %v1033 = vunpack.c.h.b16 %v901
    %v1034 = vunpack.c.l.b16 %v902
    %v1035 = vunpack.c.l.b16 %v903
    %v1036 = vunpack.c.l.b16 %v904
    %v1037 = vunpack.c.l.b16 %v905
    %v1038 = vunpack.c.h.b16 %v902
    %v1039 = vunpack.c.h.b16 %v903
    %v1040 = vunpack.c.h.b16 %v904
    %v1041 = vunpack.c.h.b16 %v905
    %v1042 = vunpack.c.l.b16 %v906
    %v1043 = vunpack.c.l.b16 %v907
    %v1044 = vunpack.c.l.b16 %v908
    %v1045 = vunpack.c.l.b16 %v909
    %v1046 = vunpack.c.h.b16 %v906
    %v1047 = vunpack.c.h.b16 %v907
    %v1048 = vunpack.c.h.b16 %v908
    %v1049 = vunpack.c.h.b16 %v909
    %v1050 = vunpack.c.l.b16 %v910
    %v1051 = vunpack.c.l.b16 %v911
    %v1052 = vunpack.c.l.b16 %v912
    %v1053 = vunpack.c.l.b16 %v913
    %v1054 = vunpack.c.h.b16 %v910
    %v1055 = vunpack.c.h.b16 %v911
    %v1056 = vunpack.c.h.b16 %v912
    %v1057 = vunpack.c.h.b16 %v913
    %v1058 = vunpack.c.l.b16 %v914
    %v1059 = vunpack.c.l.b16 %v915
    %v1060 = vunpack.c.l.b16 %v916
    %v1061 = vunpack.c.l.b16 %v917
    %v1062 = vunpack.c.h.b16 %v914
    %v1063 = vunpack.c.h.b16 %v915
    %v1064 = vunpack.c.h.b16 %v916
    %v1065 = vunpack.c.h.b16 %v917
    %v1066 = vunpack.c.l.b16 %v918
    %v1067 = vunpack.c.l.b16 %v919
    %v1068 = vunpack.c.l.b16 %v920
    %v1069 = vunpack.c.l.b16 %v921
    %v1070 = vunpack.c.h.b16 %v918
    %v1071 = vunpack.c.h.b16 %v919
    %v1072 = vunpack.c.h.b16 %v920
    %v1073 = vunpack.c.h.b16 %v921
    %v1074 = vunpack.c.l.b16 %v922
    %v1075 = vunpack.c.l.b16 %v923
    %v1076 = vunpack.c.l.b16 %v924
    %v1077 = vunpack.c.l.b16 %v925
    %v1078 = vunpack.c.h.b16 %v922
    %v1079 = vunpack.c.h.b16 %v923
    %v1080 = vunpack.c.h.b16 %v924
    %v1081 = vunpack.c.h.b16 %v925
    %v1082 = vunpack.c.l.b16 %v926
    %v1083 = vunpack.c.l.b16 %v927
    %v1084 = vunpack.c.l.b16 %v928
    %v1085 = vunpack.c.l.b16 %v929
    %v1086 = vunpack.c.h.b16 %v926
    %v1087 = vunpack.c.h.b16 %v927
    %v1088 = vunpack.c.h.b16 %v928
    %v1089 = vunpack.c.h.b16 %v929
    %v1090 = vunpack.c.l.b16 %v930
    %v1091 = vunpack.c.l.b16 %v931
    %v1092 = vunpack.c.l.b16 %v932
    %v1093 = vunpack.c.l.b16 %v933
    %v1094 = vunpack.c.h.b16 %v930
    %v1095 = vunpack.c.h.b16 %v931
    %v1096 = vunpack.c.h.b16 %v932
    %v1097 = vunpack.c.h.b16 %v933
    %v1098 = vunpack.c.l.b16 %v934
    %v1099 = vunpack.c.l.b16 %v935
    %v1100 = vunpack.c.l.b16 %v936
    %v1101 = vunpack.c.l.b16 %v937
    %v1102 = vunpack.c.h.b16 %v934
    %v1103 = vunpack.c.h.b16 %v935
    %v1104 = vunpack.c.h.b16 %v936
    %v1105 = vunpack.c.h.b16 %v937
    %v1106 = vunpack.c.l.b16 %v938
    %v1107 = vunpack.c.l.b16 %v939
    %v1108 = vunpack.c.l.b16 %v940
    %v1109 = vunpack.c.l.b16 %v941
    %v1110 = vunpack.c.h.b16 %v938
    %v1111 = vunpack.c.h.b16 %v939
    %v1112 = vunpack.c.h.b16 %v940
    %v1113 = vunpack.c.h.b16 %v941
    %v1114 = vunpack.c.l.b16 %v942
    %v1115 = vunpack.c.l.b16 %v943
    %v1116 = vunpack.c.l.b16 %v944
    %v1117 = vunpack.c.l.b16 %v945
    %v1118 = vunpack.c.h.b16 %v942
    %v1119 = vunpack.c.h.b16 %v943
    %v1120 = vunpack.c.h.b16 %v944
    %v1121 = vunpack.c.h.b16 %v945
    %v1122 = vunpack.c.l.b16 %v946
    %v1123 = vunpack.c.l.b16 %v947
    %v1124 = vunpack.c.l.b16 %v948
    %v1125 = vunpack.c.l.b16 %v949
    %v1126 = vunpack.c.h.b16 %v946
    %v1127 = vunpack.c.h.b16 %v947
    %v1128 = vunpack.c.h.b16 %v948
    %v1129 = vunpack.c.h.b16 %v949
    %v1130 = vunpack.c.l.b16 %v950
    %v1131 = vunpack.c.l.b16 %v951
    %v1132 = vunpack.c.l.b16 %v952
    %v1133 = vunpack.c.l.b16 %v953
    %v1134 = vunpack.c.h.b16 %v950
    %v1135 = vunpack.c.h.b16 %v951
    %v1136 = vunpack.c.h.b16 %v952
    %v1137 = vunpack.c.h.b16 %v953
    %v1138 = vunpack.c.l.b16 %v954
    %v1139 = vunpack.c.l.b16 %v955
    %v1140 = vunpack.c.l.b16 %v956
    %v1141 = vunpack.c.l.b16 %v957
    %v1142 = vunpack.c.h.b16 %v954
    %v1143 = vunpack.c.h.b16 %v955
    %v1144 = vunpack.c.h.b16 %v956
    %v1145 = vunpack.c.h.b16 %v957
    %v1146 = vunpack.c.l.b16 %v958
    %v1147 = vunpack.c.l.b16 %v959
    %v1148 = vunpack.c.l.b16 %v960
    %v1149 = vunpack.c.l.b16 %v961
    %v1150 = vunpack.c.h.b16 %v958
    %v1151 = vunpack.c.h.b16 %v959
    %v1152 = vunpack.c.h.b16 %v960
    %v1153 = vunpack.c.h.b16 %v961
    %v1154 = vpack.c.b16 %v1027, %v1026
    %v1155 = vpack.c.b16 %v1029, %v1028
    %v1156 = vpack.c.b16 %v1031, %v1030
    %v1157 = vpack.c.b16 %v1033, %v1032
    %v1158 = vpack.c.b16 %v1035, %v1034
    %v1159 = vpack.c.b16 %v1037, %v1036
    %v1160 = vpack.c.b16 %v1039, %v1038
    %v1161 = vpack.c.b16 %v1041, %v1040
    %v1162 = vpack.c.b16 %v1043, %v1042
    %v1163 = vpack.c.b16 %v1045, %v1044
    %v1164 = vpack.c.b16 %v1047, %v1046
    %v1165 = vpack.c.b16 %v1049, %v1048
    %v1166 = vpack.c.b16 %v1051, %v1050
    %v1167 = vpack.c.b16 %v1053, %v1052
    %v1168 = vpack.c.b16 %v1055, %v1054
    %v1169 = vpack.c.b16 %v1057, %v1056
    %v1170 = vpack.c.b16 %v1059, %v1058
    %v1171 = vpack.c.b16 %v1061, %v1060
    %v1172 = vpack.c.b16 %v1063, %v1062
    %v1173 = vpack.c.b16 %v1065, %v1064
    %v1174 = vpack.c.b16 %v1067, %v1066
    %v1175 = vpack.c.b16 %v1069, %v1068
    %v1176 = vpack.c.b16 %v1071, %v1070
    %v1177 = vpack.c.b16 %v1073, %v1072
    %v1178 = vpack.c.b16 %v1075, %v1074
    %v1179 = vpack.c.b16 %v1077, %v1076
    %v1180 = vpack.c.b16 %v1079, %v1078
    %v1181 = vpack.c.b16 %v1081, %v1080
    %v1182 = vpack.c.b16 %v1083, %v1082
    %v1183 = vpack.c.b16 %v1085, %v1084
    %v1184 = vpack.c.b16 %v1087, %v1086
    %v1185 = vpack.c.b16 %v1089, %v1088
    %v1186 = vpack.c.b16 %v1091, %v1090
    %v1187 = vpack.c.b16 %v1093, %v1092
    %v1188 = vpack.c.b16 %v1095, %v1094
    %v1189 = vpack.c.b16 %v1097, %v1096
    %v1190 = vpack.c.b16 %v1099, %v1098
    %v1191 = vpack.c.b16 %v1101, %v1100
    %v1192 = vpack.c.b16 %v1103, %v1102
    %v1193 = vpack.c.b16 %v1105, %v1104
    %v1194 = vpack.c.b16 %v1107, %v1106
    %v1195 = vpack.c.b16 %v1109, %v1108
    %v1196 = vpack.c.b16 %v1111, %v1110
    %v1197 = vpack.c.b16 %v1113, %v1112
    %v1198 = vpack.c.b16 %v1115, %v1114
    %v1199 = vpack.c.b16 %v1117, %v1116
    %v1200 = vpack.c.b16 %v1119, %v1118
    %v1201 = vpack.c.b16 %v1121, %v1120
    %v1202 = vpack.c.b16 %v1123, %v1122
    %v1203 = vpack.c.b16 %v1125, %v1124
    %v1204 = vpack.c.b16 %v1127, %v1126
    %v1205 = vpack.c.b16 %v1129, %v1128
    %v1206 = vpack.c.b16 %v1131, %v1130
    %v1207 = vpack.c.b16 %v1133, %v1132
    %v1208 = vpack.c.b16 %v1135, %v1134
    %v1209 = vpack.c.b16 %v1137, %v1136
    %v1210 = vpack.c.b16 %v1139, %v1138
    %v1211 = vpack.c.b16 %v1141, %v1140
    %v1212 = vpack.c.b16 %v1143, %v1142
    %v1213 = vpack.c.b16 %v1145, %v1144
    %v1214 = vpack.c.b16 %v1147, %v1146
    %v1215 = vpack.c.b16 %v1149, %v1148
    %v1216 = vpack.c.b16 %v1151, %v1150
    %v1217 = vpack.c.b16 %v1153, %v1152
    %1282 = vst [vmem:[#allocation7] sm:$0xff] %v1154
    %1283 = vst [vmem:[#allocation7 + $0x8] sm:$0xff] %v1155
    %1284 = vst [vmem:[#allocation7 + $0x10] sm:$0xff] %v1156
    %1285 = vst [vmem:[#allocation7 + $0x18] sm:$0xff] %v1157
    %1286 = vst [vmem:[#allocation7 + $0x20] sm:$0xff] %v1158
    %1287 = vst [vmem:[#allocation7 + $0x28] sm:$0xff] %v1159
    %1288 = vst [vmem:[#allocation7 + $0x30] sm:$0xff] %v1160
    %1289 = vst [vmem:[#allocation7 + $0x38] sm:$0xff] %v1161
    %1290 = vst [vmem:[#allocation7 + $0x40] sm:$0xff] %v1162
    %1291 = vst [vmem:[#allocation7 + $0x48] sm:$0xff] %v1163
    %1292 = vst [vmem:[#allocation7 + $0x50] sm:$0xff] %v1164
    %1293 = vst [vmem:[#allocation7 + $0x58] sm:$0xff] %v1165
    %1294 = vst [vmem:[#allocation7 + $0x60] sm:$0xff] %v1166
    %1295 = vst [vmem:[#allocation7 + $0x68] sm:$0xff] %v1167
    %1296 = vst [vmem:[#allocation7 + $0x70] sm:$0xff] %v1168
    %1297 = vst [vmem:[#allocation7 + $0x78] sm:$0xff] %v1169
    %1298 = vst [vmem:[#allocation7 + $0x80] sm:$0xff] %v1170
    %1299 = vst [vmem:[#allocation7 + $0x88] sm:$0xff] %v1171
    %1300 = vst [vmem:[#allocation7 + $0x90] sm:$0xff] %v1172
    %1301 = vst [vmem:[#allocation7 + $0x98] sm:$0xff] %v1173
    %1302 = vst [vmem:[#allocation7 + $0xa0] sm:$0xff] %v1174
    %1303 = vst [vmem:[#allocation7 + $0xa8] sm:$0xff] %v1175
    %1304 = vst [vmem:[#allocation7 + $0xb0] sm:$0xff] %v1176
    %1305 = vst [vmem:[#allocation7 + $0xb8] sm:$0xff] %v1177
    %1306 = vst [vmem:[#allocation7 + $0xc0] sm:$0xff] %v1178
    %1307 = vst [vmem:[#allocation7 + $0xc8] sm:$0xff] %v1179
    %1308 = vst [vmem:[#allocation7 + $0xd0] sm:$0xff] %v1180
    %1309 = vst [vmem:[#allocation7 + $0xd8] sm:$0xff] %v1181
    %1310 = vst [vmem:[#allocation7 + $0xe0] sm:$0xff] %v1182
    %1311 = vst [vmem:[#allocation7 + $0xe8] sm:$0xff] %v1183
    %1312 = vst [vmem:[#allocation7 + $0xf0] sm:$0xff] %v1184
    %1313 = vst [vmem:[#allocation7 + $0xf8] sm:$0xff] %v1185
    %1314 = vst [vmem:[#allocation7 + $0x100] sm:$0xff] %v1186
    %1315 = vst [vmem:[#allocation7 + $0x108] sm:$0xff] %v1187
    %1316 = vst [vmem:[#allocation7 + $0x110] sm:$0xff] %v1188
    %1317 = vst [vmem:[#allocation7 + $0x118] sm:$0xff] %v1189
    %1318 = vst [vmem:[#allocation7 + $0x120] sm:$0xff] %v1190
    %1319 = vst [vmem:[#allocation7 + $0x128] sm:$0xff] %v1191
    %1320 = vst [vmem:[#allocation7 + $0x130] sm:$0xff] %v1192
    %1321 = vst [vmem:[#allocation7 + $0x138] sm:$0xff] %v1193
    %1322 = vst [vmem:[#allocation7 + $0x140] sm:$0xff] %v1194
    %1323 = vst [vmem:[#allocation7 + $0x148] sm:$0xff] %v1195
    %1324 = vst [vmem:[#allocation7 + $0x150] sm:$0xff] %v1196
    %1325 = vst [vmem:[#allocation7 + $0x158] sm:$0xff] %v1197
    %1326 = vst [vmem:[#allocation7 + $0x160] sm:$0xff] %v1198
    %1327 = vst [vmem:[#allocation7 + $0x168] sm:$0xff] %v1199
    %1328 = vst [vmem:[#allocation7 + $0x170] sm:$0xff] %v1200
    %1329 = vst [vmem:[#allocation7 + $0x178] sm:$0xff] %v1201
    %1330 = vst [vmem:[#allocation7 + $0x180] sm:$0xff] %v1202
    %1331 = vst [vmem:[#allocation7 + $0x188] sm:$0xff] %v1203
    %1332 = vst [vmem:[#allocation7 + $0x190] sm:$0xff] %v1204
    %1333 = vst [vmem:[#allocation7 + $0x198] sm:$0xff] %v1205
    %1334 = vst [vmem:[#allocation7 + $0x1a0] sm:$0xff] %v1206
    %1335 = vst [vmem:[#allocation7 + $0x1a8] sm:$0xff] %v1207
    %1336 = vst [vmem:[#allocation7 + $0x1b0] sm:$0xff] %v1208
    %1337 = vst [vmem:[#allocation7 + $0x1b8] sm:$0xff] %v1209
    %1338 = vst [vmem:[#allocation7 + $0x1c0] sm:$0xff] %v1210
    %1339 = vst [vmem:[#allocation7 + $0x1c8] sm:$0xff] %v1211
    %1340 = vst [vmem:[#allocation7 + $0x1d0] sm:$0xff] %v1212
    %1341 = vst [vmem:[#allocation7 + $0x1d8] sm:$0xff] %v1213
    %1342 = vst [vmem:[#allocation7 + $0x1e0] sm:$0xff] %v1214
    %1343 = vst [vmem:[#allocation7 + $0x1e8] sm:$0xff] %v1215
    %1344 = vst [vmem:[#allocation7 + $0x1f0] sm:$0xff] %v1216
    %1345 = vst [vmem:[#allocation7 + $0x1f8] sm:$0xff] %v1217
    %v1346 = vld [vmem:[%s2] sm:$0x1]
    %v1348 = vlaneseq
    %v1349 = vshrl.u32 %v1348, 7
    %v1350 = vsub.s32 0, %v1349
    %v1351 = vrot.slane %v1346, %v1350
    %v1353 = vadd.f32 %v772, %v1351
    %v1354 = vadd.f32 %v775, %v1351
    %v1355 = vadd.f32 %v780, %v1351
    %v1356 = vadd.f32 %v783, %v1351
    %v1357 = vadd.f32 %v788, %v1351
    %v1358 = vadd.f32 %v791, %v1351
    %v1359 = vadd.f32 %v796, %v1351
    %v1360 = vadd.f32 %v799, %v1351
    %v1361 = vadd.f32 %v804, %v1351
    %v1362 = vadd.f32 %v807, %v1351
    %v1363 = vadd.f32 %v812, %v1351
    %v1364 = vadd.f32 %v815, %v1351
    %v1365 = vadd.f32 %v820, %v1351
    %v1366 = vadd.f32 %v823, %v1351
    %v1367 = vadd.f32 %v828, %v1351
    %v1368 = vadd.f32 %v831, %v1351
    %v1369 = vadd.f32 %v836, %v1351
    %v1370 = vadd.f32 %v839, %v1351
    %v1371 = vadd.f32 %v844, %v1351
    %v1372 = vadd.f32 %v847, %v1351
    %v1373 = vadd.f32 %v852, %v1351
    %v1374 = vadd.f32 %v855, %v1351
    %v1375 = vadd.f32 %v860, %v1351
    %v1376 = vadd.f32 %v863, %v1351
    %v1377 = vadd.f32 %v868, %v1351
    %v1378 = vadd.f32 %v871, %v1351
    %v1379 = vadd.f32 %v876, %v1351
    %v1380 = vadd.f32 %v879, %v1351
    %v1381 = vadd.f32 %v884, %v1351
    %v1382 = vadd.f32 %v887, %v1351
    %v1383 = vadd.f32 %v892, %v1351
    %v1384 = vadd.f32 %v895, %v1351
    %1385 = vst [vmem:[#allocation8] sm:$0xff] %v1353
    %1386 = vst [vmem:[#allocation8 + $0x8] sm:$0xff] %v1354
    %1387 = vst [vmem:[#allocation8 + $0x10] sm:$0xff] %v1355
    %1388 = vst [vmem:[#allocation8 + $0x18] sm:$0xff] %v1356
    %1389 = vst [vmem:[#allocation8 + $0x20] sm:$0xff] %v1357
    %1390 = vst [vmem:[#allocation8 + $0x28] sm:$0xff] %v1358
    %1391 = vst [vmem:[#allocation8 + $0x30] sm:$0xff] %v1359
    %1392 = vst [vmem:[#allocation8 + $0x38] sm:$0xff] %v1360
    %1393 = vst [vmem:[#allocation8 + $0x40] sm:$0xff] %v1361
    %1394 = vst [vmem:[#allocation8 + $0x48] sm:$0xff] %v1362
    %1395 = vst [vmem:[#allocation8 + $0x50] sm:$0xff] %v1363
    %1396 = vst [vmem:[#allocation8 + $0x58] sm:$0xff] %v1364
    %1397 = vst [vmem:[#allocation8 + $0x60] sm:$0xff] %v1365
    %1398 = vst [vmem:[#allocation8 + $0x68] sm:$0xff] %v1366
    %1399 = vst [vmem:[#allocation8 + $0x70] sm:$0xff] %v1367
    %1400 = vst [vmem:[#allocation8 + $0x78] sm:$0xff] %v1368
    %1401 = vst [vmem:[#allocation8 + $0x80] sm:$0xff] %v1369
    %1402 = vst [vmem:[#allocation8 + $0x88] sm:$0xff] %v1370
    %1403 = vst [vmem:[#allocation8 + $0x90] sm:$0xff] %v1371
    %1404 = vst [vmem:[#allocation8 + $0x98] sm:$0xff] %v1372
    %1405 = vst [vmem:[#allocation8 + $0xa0] sm:$0xff] %v1373
    %1406 = vst [vmem:[#allocation8 + $0xa8] sm:$0xff] %v1374
    %1407 = vst [vmem:[#allocation8 + $0xb0] sm:$0xff] %v1375
    %1408 = vst [vmem:[#allocation8 + $0xb8] sm:$0xff] %v1376
    %1409 = vst [vmem:[#allocation8 + $0xc0] sm:$0xff] %v1377
    %1410 = vst [vmem:[#allocation8 + $0xc8] sm:$0xff] %v1378
    %1411 = vst [vmem:[#allocation8 + $0xd0] sm:$0xff] %v1379
    %1412 = vst [vmem:[#allocation8 + $0xd8] sm:$0xff] %v1380
    %1413 = vst [vmem:[#allocation8 + $0xe0] sm:$0xff] %v1381
    %1414 = vst [vmem:[#allocation8 + $0xe8] sm:$0xff] %v1382
    %1415 = vst [vmem:[#allocation8 + $0xf0] sm:$0xff] %v1383
    %1416 = vst [vmem:[#allocation8 + $0xf8] sm:$0xff] %v1384
    // Predicated region
    $region22: #{tpu_custom_call.1} parent=1 // pred_check
      _
    $region23: #{tpu_custom_call.1} parent=1 // pred_check_branch
      %1418 = sbr.rel (0) target = $region25
    $region24: #{tpu_custom_call.1} parent=1 // pred_region
      %s1420 = ssub.s32 8192, 8192
      %1421 = vsyncadd [#allocation4], %s1420
      %s1422 = sshll.u32 [#allocation7], 4
      %s1423 = int_to_ptr.vmem [resolvable:$true] %s1422
      %1428 = dma.vmem_to_hbm [thread:$0]  %s1423, 8192, %s3, [#allocation4], 256, 256, 16
    $region25: #{tpu_custom_call.1} parent=1 // pred_fallthru
      _
    // Predicated region
    $region26: #{tpu_custom_call.1} parent=1 // pred_check
      _
    $region27: #{tpu_custom_call.1} parent=1 // pred_check_branch
      %1430 = sbr.rel (0) target = $region29
    $region28: #{tpu_custom_call.1} parent=1 // pred_region
      %s1432 = ssub.s32 4096, 4096
      %1433 = vsyncadd [#allocation9], %s1432
      %s1434 = sshll.u32 [#allocation8], 4
      %s1435 = int_to_ptr.vmem [resolvable:$true] %s1434
      %1440 = dma.vmem_to_hbm [thread:$0]  %s1435, 4096, %s4, [#allocation9], 128, 128, 8
    $region29: #{tpu_custom_call.1} parent=1 // pred_fallthru
      _
    // Predicated region
    $region30: #{tpu_custom_call.1} parent=1 // pred_check
      _
    $region31: #{tpu_custom_call.1} parent=1 // pred_check_branch
      %1442 = sbr.rel (0) target = $region33
    $region32: #{tpu_custom_call.1} parent=1 // pred_region
      %1443 = dma.done [#allocation4], 8192
    $region33: #{tpu_custom_call.1} parent=1 // pred_fallthru
      _
    // Predicated region
    $region34: #{tpu_custom_call.1} parent=1 // pred_check
      _
    $region35: #{tpu_custom_call.1} parent=1 // pred_check_branch
      %1445 = sbr.rel (0) target = $region37
    $region36: #{tpu_custom_call.1} parent=1 // pred_region
      %1446 = dma.done [#allocation9], 4096
    $region37: #{tpu_custom_call.1} parent=1 // pred_fallthru
      _
    %1447 = vsyncpa [#allocation3], 1
    %1448 = vsyncpa [#allocation6], 1
    %1449 = vsyncpa [#allocation4], 1
    %1450 = vsyncpa [#allocation9], 1

</llo_original>
